<compile_context>
chip_gen: v5e
topology: v5e:2x2
jax: 0.10.0
libtpu: 0.0.40
codegen_flags: <defaults>
</compile_context>

<pallas_src>
import jax
import jax.numpy as jnp
from jax.experimental import pallas as pl
from jax.experimental.pallas import tpu as pltpu

WEIGHT_ANGLE = 10.0
OHEM_RATIO = 3.0
_TARGET_ROWS = 256        # rows of 128 pixels per grid step (~32K pixels)


def _cdiv(a, b):
    return (a + b - 1) // b


def _round_up(a, b):
    return _cdiv(a, b) * b


def _east_kernel(pred_cls_ref, pred_geo_ref, gt_score_ref, gt_geo_ref, ign_ref,
                 neg_loss_ref, stats_ref, acc_ref):
    i = pl.program_id(1)

    @pl.when(i == 0)
    def _init():
        acc_ref[...] = jnp.zeros_like(acc_ref)

    score = gt_score_ref[0, 0, :, :]            # (r_tile, 128), dense vregs
    ign = ign_ref[0, 0, :, :]
    target = jnp.floor(score)                   # mimics .long() truncation (>= 0)
    train_mask = jnp.floor(1.0 - ign)
    pos_mask = target * train_mask
    neg_mask = (1.0 - target) * train_mask

    # --- 2-class softmax CE via a single stable softplus ---
    # ce(label=1) = lse - x1 = softplus(x0 - x1); ce(label=0) = ce_pos - (x0 - x1)
    x0 = pred_cls_ref[0, 0, :, :]
    x1 = pred_cls_ref[0, 1, :, :]
    d = x0 - x1
    softplus_d = jnp.maximum(d, 0.0) + jnp.log(1.0 + jnp.exp(-jnp.abs(d)))
    ce_pos = softplus_d
    ce_neg = softplus_d - d

    # per-pixel negative CE map (sentinel -1 where the pixel is not a negative)
    neg_loss_ref[0, :, :] = jnp.where(neg_mask > 0.0, ce_neg, -1.0)

    # --- EAST geo loss maps (IoU + angle) ---
    d1g = gt_geo_ref[0, 0, :, :]; d2g = gt_geo_ref[0, 1, :, :]
    d3g = gt_geo_ref[0, 2, :, :]; d4g = gt_geo_ref[0, 3, :, :]
    ag = gt_geo_ref[0, 4, :, :]
    d1p = pred_geo_ref[0, 0, :, :]; d2p = pred_geo_ref[0, 1, :, :]
    d3p = pred_geo_ref[0, 2, :, :]; d4p = pred_geo_ref[0, 3, :, :]
    ap = pred_geo_ref[0, 4, :, :]

    area_gt = (d1g + d2g) * (d3g + d4g)
    area_pred = (d1p + d2p) * (d3p + d4p)
    w_union = jnp.minimum(d3g, d3p) + jnp.minimum(d4g, d4p)
    h_union = jnp.minimum(d1g, d1p) + jnp.minimum(d2g, d2p)
    area_int = w_union * h_union
    area_union = area_gt + area_pred - area_int
    # -log((ai+1)/(au+1)) == log(au+1) - log(ai+1): no divide needed
    iou_map = jnp.log(area_union + 1.0) - jnp.log(area_int + 1.0)
    angle_map = 1.0 - jnp.cos(ap - ag)

    sums = (jnp.sum(score),
            jnp.sum(angle_map * score),
            jnp.sum(iou_map * score),
            jnp.sum(pos_mask),
            jnp.sum(neg_mask),
            jnp.sum(ce_pos * pos_mask))
    row = jax.lax.broadcasted_iota(jnp.int32, (8, 128), 0)
    contrib = jnp.zeros((8, 128), jnp.float32)
    for k, s in enumerate(sums):
        contrib = contrib + jnp.where(row == k, s, 0.0)
    acc_ref[...] += contrib

    # write the per-batch stats block only once, on the last inner step
    @pl.when(i == pl.num_programs(1) - 1)
    def _fin():
        stats_ref[0, :, :] = acc_ref[...]


def east_loss(pred_score, pred_geo, gt_score, gt_geo, ignored_map,
              weight_angle=WEIGHT_ANGLE, ohem_ratio=OHEM_RATIO):
    n, _, h, w = pred_score.shape
    hw = h * w
    rows = _cdiv(hw, 128)
    num_tiles = _cdiv(rows, _TARGET_ROWS)
    r_tile = _round_up(_cdiv(rows, num_tiles), 8)
    r_pad = r_tile * num_tiles
    hw_pad = r_pad * 128

    def prep(x, pad_value):
        c = x.shape[1]
        x = x.reshape(n, c, hw).astype(jnp.float32)   # view-only reshape, no transpose
        if hw_pad != hw:
            x = jnp.pad(x, ((0, 0), (0, 0), (0, hw_pad - hw)),
                        constant_values=pad_value)
        return x.reshape(n, c, r_pad, 128)

    pred_cls = prep(pred_score, 0.0)
    pred_g = prep(pred_geo, 0.0)
    gt_s = prep(gt_score, 0.0)
    gt_g = prep(gt_geo, 0.0)
    ign = prep(ignored_map, 1.0)   # padded pixels count as ignored -> zero contribution

    grid = (n, num_tiles)
    neg_loss, stats = pl.pallas_call(
        _east_kernel,
        out_shape=(jax.ShapeDtypeStruct((n, r_pad, 128), jnp.float32),
                   jax.ShapeDtypeStruct((n, 8, 128), jnp.float32)),
        grid_spec=pltpu.PrefetchScalarGridSpec(
            num_scalar_prefetch=0,
            grid=grid,
            in_specs=[
                pl.BlockSpec((1, 2, r_tile, 128), lambda b, i: (b, 0, i, 0)),
                pl.BlockSpec((1, 5, r_tile, 128), lambda b, i: (b, 0, i, 0)),
                pl.BlockSpec((1, 1, r_tile, 128), lambda b, i: (b, 0, i, 0)),
                pl.BlockSpec((1, 5, r_tile, 128), lambda b, i: (b, 0, i, 0)),
                pl.BlockSpec((1, 1, r_tile, 128), lambda b, i: (b, 0, i, 0)),
            ],
            out_specs=[
                pl.BlockSpec((1, r_tile, 128), lambda b, i: (b, i, 0)),
                pl.BlockSpec((1, 8, 128), lambda b, i: (b, 0, 0)),   # per-batch stats
            ],
            scratch_shapes=[pltpu.VMEM((8, 128), jnp.float32)],
        ),
        compiler_params=pltpu.CompilerParams(
            dimension_semantics=("parallel", "arbitrary")),
    )(pred_cls, pred_g, gt_s, gt_g, ign)

    totals = jnp.sum(stats[:, :6, 0], axis=0)   # reduce per-core/per-batch partials
    sum_score = totals[0]
    sum_angle = totals[1]
    sum_iou = totals[2]
    n_pos = totals[3]
    n_neg_count = totals[4]
    loss_pos_sum = totals[5]

    angle_loss = sum_angle / sum_score
    iou_loss = sum_iou / sum_score
    geo_loss = weight_angle * angle_loss + iou_loss

    n_neg = jnp.where(n_pos > 0,
                      jnp.minimum(n_neg_count, jnp.floor(ohem_ratio * n_pos)),
                      100.0)

    # --- OHEM top-k sum without a full sort ---
    # Exact k-th-largest threshold via binary search over the f32 bit space
    # (integer order == float order for non-negative values), then
    # topk_sum = sum(y > t*) + (k - count(y > t*)) * t*  (tie-safe, exact).
    # TODO(synk): the 32 count passes could be folded into the main kernel as a
    # fixed-bin histogram of ce_neg; kept in JAX glue since k is data-dependent.
    y = jnp.maximum(neg_loss.reshape(-1), 0.0)   # sentinels(-1) -> 0; real CE >= 0
    size = y.shape[0]
    k_sel = jnp.minimum(n_neg, float(size)).astype(jnp.int32)

    def _bs_body(_, carry):
        lo, hi = carry
        mid = lo + (hi - lo + 1) // 2
        t = jax.lax.bitcast_convert_type(mid, jnp.float32)
        cnt = jnp.sum((y >= t).astype(jnp.int32))
        ok = cnt >= k_sel
        return jnp.where(ok, mid, lo), jnp.where(ok, hi, mid - 1)

    lo, _ = jax.lax.fori_loop(0, 32, _bs_body,
                              (jnp.int32(0), jnp.int32(0x7F7FFFFF)))
    t_star = jax.lax.bitcast_convert_type(lo, jnp.float32)
    gt_mask = y > t_star
    sum_gt = jnp.sum(jnp.where(gt_mask, y, 0.0))
    cnt_gt = jnp.sum(gt_mask.astype(jnp.int32))
    topk_sum = sum_gt + (k_sel - cnt_gt).astype(jnp.float32) * t_star

    classify_loss = (jnp.where(n_pos > 0, loss_pos_sum, 0.0) + topk_sum) / (n_pos + n_neg)

    # data-dependent early return (sum(gt_score) < 1) replaced by jnp.where
    valid = sum_score >= 1.0
    return dict(loss_cls=jnp.where(valid, classify_loss, 0.0),
                loss_geo=jnp.where(valid, geo_loss, 0.0))


def _reference(pred_score, pred_geo, gt_score, gt_geo, ignored_map,
               weight_angle=WEIGHT_ANGLE, ohem_ratio=OHEM_RATIO):
    """Pure-JAX replica of the PyTorch forward for verification (sort-based OHEM)."""
    pred = jnp.transpose(pred_score, (0, 2, 3, 1)).reshape(-1, 2)
    score = jnp.transpose(gt_score, (0, 2, 3, 1))[..., 0].reshape(-1)
    mask = jnp.transpose(1.0 - ignored_map, (0, 2, 3, 1))[..., 0].reshape(-1)
    tgt = jnp.floor(score)
    trm = jnp.floor(mask)
    pos = tgt * trm
    neg = (1.0 - tgt) * trm
    lse = jax.nn.logsumexp(pred, axis=-1)
    ce_pos = lse - pred[:, 1]
    ce_neg = lse - pred[:, 0]
    n_pos = jnp.sum(pos)
    n_neg_count = jnp.sum(neg)
    loss_pos = jnp.sum(ce_pos * pos)
    n_neg = jnp.where(n_pos > 0, jnp.minimum(n_neg_count, jnp.floor(ohem_ratio * n_pos)), 100.0)
    neg_losses = jnp.where(neg > 0, ce_neg, -1.0)
    sorted_neg = -jnp.sort(-neg_losses)
    idx = jnp.arange(sorted_neg.shape[0], dtype=jnp.float32)
    topk_sum = jnp.sum(jnp.where(idx < n_neg, jnp.maximum(sorted_neg, 0.0), 0.0))
    classify_loss = (jnp.where(n_pos > 0, loss_pos, 0.0) + topk_sum) / (n_pos + n_neg)

    d1g, d2g, d3g, d4g, ag = jnp.split(gt_geo, 5, axis=1)
    d1p, d2p, d3p, d4p, ap = jnp.split(pred_geo, 5, axis=1)
    area_gt = (d1g + d2g) * (d3g + d4g)
    area_pred = (d1p + d2p) * (d3p + d4p)
    w_u = jnp.minimum(d3g, d3p) + jnp.minimum(d4g, d4p)
    h_u = jnp.minimum(d1g, d1p) + jnp.minimum(d2g, d2p)
    a_i = w_u * h_u
    a_u = area_gt + area_pred - a_i
    iou_map = -jnp.log((a_i + 1.0) / (a_u + 1.0))
    ang_map = 1.0 - jnp.cos(ap - ag)
    s = jnp.sum(gt_score)
    geo_loss = weight_angle * (jnp.sum(ang_map * gt_score) / s) + jnp.sum(iou_map * gt_score) / s
    valid = s >= 1.0
    return dict(loss_cls=jnp.where(valid, classify_loss, 0.0),
                loss_geo=jnp.where(valid, geo_loss, 0.0))


if __name__ == "__main__":
    key = jax.random.PRNGKey(0)
    k1, k2, k3, k4, k5 = jax.random.split(key, 5)
    N, H, W = 2, 16, 16
    pred_score = jax.random.normal(k1, (N, 2, H, W), jnp.float32)
    pred_geo = jax.random.uniform(k2, (N, 5, H, W), jnp.float32, 0.0, 8.0)
    gt_score = (jax.random.uniform(k3, (N, 1, H, W)) < 0.3).astype(jnp.float32)
    gt_geo = jax.random.uniform(k4, (N, 5, H, W), jnp.float32, 0.0, 8.0)
    ignored_map = (jax.random.uniform(k5, (N, 1, H, W)) < 0.1).astype(jnp.float32)

    out = east_loss(pred_score, pred_geo, gt_score, gt_geo, ignored_map)
    jax.block_until_ready(out)

    ref = _reference(pred_score, pred_geo, gt_score, gt_geo, ignored_map)
    for name in ("loss_cls", "loss_geo"):
        a, b = float(out[name]), float(ref[name])
        assert abs(a - b) <= 1e-3 * (1.0 + abs(b)), (name, a, b)

    print("KERNEL_OK")
</pallas_src>

<mosaic_0001>
module attributes {stable_mosaic.version = 11 : i64} {
  func.func @_east_kernel(%arg0: i32, %arg1: i32, %arg2: memref<1x2x8x128xf32, #tpu.memory_space<vmem>>, %arg3: memref<1x5x8x128xf32, #tpu.memory_space<vmem>>, %arg4: memref<1x1x8x128xf32, #tpu.memory_space<vmem>>, %arg5: memref<1x5x8x128xf32, #tpu.memory_space<vmem>>, %arg6: memref<1x1x8x128xf32, #tpu.memory_space<vmem>>, %arg7: memref<1x8x128xf32, #tpu.memory_space<vmem>>, %arg8: memref<1x8x128xf32, #tpu.memory_space<vmem>>, %arg9: memref<8x128xf32, #tpu.memory_space<vmem>>) attributes {dimension_semantics = [#tpu.dimension_semantics<parallel>, #tpu.dimension_semantics<arbitrary>], iteration_bounds = array<i64: 2, 1>, scalar_prefetch = 0 : i64, scratch_operands = 1 : i64, tpu.core_type = #tpu.core_type<tc>, window_params = [{transform_indices = @transform_0, window_bounds = array<i64: 1, 2, 8, 128>}, {transform_indices = @transform_1, window_bounds = array<i64: 1, 5, 8, 128>}, {transform_indices = @transform_2, window_bounds = array<i64: 1, 1, 8, 128>}, {transform_indices = @transform_3, window_bounds = array<i64: 1, 5, 8, 128>}, {transform_indices = @transform_4, window_bounds = array<i64: 1, 1, 8, 128>}, {transform_indices = @transform_5, window_bounds = array<i64: 1, 8, 128>}, {transform_indices = @transform_6, window_bounds = array<i64: 1, 8, 128>}]} {
    %c0_i32 = arith.constant 0 : i32
    %0 = arith.cmpi eq, %arg1, %c0_i32 : i32
    %1 = arith.extui %0 : i1 to i32
    %c0_i32_0 = arith.constant 0 : i32
    %2 = arith.cmpi ne, %1, %c0_i32_0 : i32
    scf.if %2 {
      %cst_84 = arith.constant 0.000000e+00 : f32
      %155 = vector.broadcast %cst_84 : f32 to vector<8x128xf32>
      %c0_85 = arith.constant 0 : index
      %c0_86 = arith.constant 0 : index
      %156 = vector.load %arg9[%c0_85, %c0_86] : memref<8x128xf32, #tpu.memory_space<vmem>>, vector<8x128xf32>
      tpu.vector_store %arg9[%c0_85, %c0_86], %155 {strides = array<i32>} : memref<8x128xf32, #tpu.memory_space<vmem>>, vector<8x128xf32>,
    } else {
    }
    %c0 = arith.constant 0 : index
    %c0_1 = arith.constant 0 : index
    %c0_2 = arith.constant 0 : index
    %c0_3 = arith.constant 0 : index
    %3 = vector.load %arg4[%c0, %c0_1, %c0_2, %c0_3] : memref<1x1x8x128xf32, #tpu.memory_space<vmem>>, vector<1x1x8x128xf32>
    %4 = vector.shape_cast %3 : vector<1x1x8x128xf32> to vector<8x128xf32>
    %c0_4 = arith.constant 0 : index
    %c0_5 = arith.constant 0 : index
    %c0_6 = arith.constant 0 : index
    %c0_7 = arith.constant 0 : index
    %5 = vector.load %arg6[%c0_4, %c0_5, %c0_6, %c0_7] : memref<1x1x8x128xf32, #tpu.memory_space<vmem>>, vector<1x1x8x128xf32>
    %6 = vector.shape_cast %5 : vector<1x1x8x128xf32> to vector<8x128xf32>
    %7 = math.floor %4 : vector<8x128xf32>
    %cst = arith.constant 1.000000e+00 : f32
    %8 = vector.broadcast %cst : f32 to vector<8x128xf32>
    %9 = arith.subf %8, %6 : vector<8x128xf32>
    %10 = math.floor %9 : vector<8x128xf32>
    %11 = arith.mulf %7, %10 : vector<8x128xf32>
    %cst_8 = arith.constant 1.000000e+00 : f32
    %12 = vector.broadcast %cst_8 : f32 to vector<8x128xf32>
    %13 = arith.subf %12, %7 : vector<8x128xf32>
    %14 = arith.mulf %13, %10 : vector<8x128xf32>
    %c0_9 = arith.constant 0 : index
    %c0_10 = arith.constant 0 : index
    %c0_11 = arith.constant 0 : index
    %c0_12 = arith.constant 0 : index
    %15 = vector.load %arg2[%c0_9, %c0_10, %c0_11, %c0_12] : memref<1x2x8x128xf32, #tpu.memory_space<vmem>>, vector<1x1x8x128xf32>
    %16 = vector.shape_cast %15 : vector<1x1x8x128xf32> to vector<8x128xf32>
    %c0_13 = arith.constant 0 : index
    %c1 = arith.constant 1 : index
    %c0_14 = arith.constant 0 : index
    %c0_15 = arith.constant 0 : index
    %17 = vector.load %arg2[%c0_13, %c1, %c0_14, %c0_15] : memref<1x2x8x128xf32, #tpu.memory_space<vmem>>, vector<1x1x8x128xf32>
    %18 = vector.shape_cast %17 : vector<1x1x8x128xf32> to vector<8x128xf32>
    %19 = arith.subf %16, %18 : vector<8x128xf32>
    %cst_16 = arith.constant 0.000000e+00 : f32
    %20 = vector.broadcast %cst_16 : f32 to vector<8x128xf32>
    %21 = arith.maximumf %19, %20 : vector<8x128xf32>
    %22 = math.absf %19 : vector<8x128xf32>
    %cst_17 = arith.constant 0.000000e+00 : f32
    %23 = vector.broadcast %cst_17 : f32 to vector<8x128xf32>
    %24 = arith.subf %23, %22 : vector<8x128xf32>
    %25 = math.exp %24 : vector<8x128xf32>
    %cst_18 = arith.constant 1.000000e+00 : f32
    %26 = vector.broadcast %cst_18 : f32 to vector<8x128xf32>
    %27 = arith.addf %26, %25 : vector<8x128xf32>
    %28 = math.log %27 : vector<8x128xf32>
    %29 = arith.addf %21, %28 : vector<8x128xf32>
    %30 = arith.subf %29, %19 : vector<8x128xf32>
    %cst_19 = arith.constant 0.000000e+00 : f32
    %31 = vector.broadcast %cst_19 : f32 to vector<8x128xf32>
    %32 = arith.cmpf ogt, %14, %31 : vector<8x128xf32>
    %cst_20 = arith.constant -1.000000e+00 : f32
    %33 = vector.broadcast %cst_20 : f32 to vector<8x128xf32>
    %34 = arith.select %32, %30, %33 : vector<8x128xi1>, vector<8x128xf32>
    %c0_21 = arith.constant 0 : index
    %c0_22 = arith.constant 0 : index
    %c0_23 = arith.constant 0 : index
    %35 = vector.load %arg7[%c0_21, %c0_22, %c0_23] : memref<1x8x128xf32, #tpu.memory_space<vmem>>, vector<1x8x128xf32>
    %36 = vector.shape_cast %35 : vector<1x8x128xf32> to vector<8x128xf32>
    %37 = vector.shape_cast %34 : vector<8x128xf32> to vector<1x8x128xf32>
    tpu.vector_store %arg7[%c0_21, %c0_22, %c0_23], %37 {strides = array<i32>} : memref<1x8x128xf32, #tpu.memory_space<vmem>>, vector<1x8x128xf32>,
    %c0_24 = arith.constant 0 : index
    %c0_25 = arith.constant 0 : index
    %c0_26 = arith.constant 0 : index
    %c0_27 = arith.constant 0 : index
    %38 = vector.load %arg5[%c0_24, %c0_25, %c0_26, %c0_27] : memref<1x5x8x128xf32, #tpu.memory_space<vmem>>, vector<1x1x8x128xf32>
    %39 = vector.shape_cast %38 : vector<1x1x8x128xf32> to vector<8x128xf32>
    %c0_28 = arith.constant 0 : index
    %c1_29 = arith.constant 1 : index
    %c0_30 = arith.constant 0 : index
    %c0_31 = arith.constant 0 : index
    %40 = vector.load %arg5[%c0_28, %c1_29, %c0_30, %c0_31] : memref<1x5x8x128xf32, #tpu.memory_space<vmem>>, vector<1x1x8x128xf32>
    %41 = vector.shape_cast %40 : vector<1x1x8x128xf32> to vector<8x128xf32>
    %c0_32 = arith.constant 0 : index
    %c2 = arith.constant 2 : index
    %c0_33 = arith.constant 0 : index
    %c0_34 = arith.constant 0 : index
    %42 = vector.load %arg5[%c0_32, %c2, %c0_33, %c0_34] : memref<1x5x8x128xf32, #tpu.memory_space<vmem>>, vector<1x1x8x128xf32>
    %43 = vector.shape_cast %42 : vector<1x1x8x128xf32> to vector<8x128xf32>
    %c0_35 = arith.constant 0 : index
    %c3 = arith.constant 3 : index
    %c0_36 = arith.constant 0 : index
    %c0_37 = arith.constant 0 : index
    %44 = vector.load %arg5[%c0_35, %c3, %c0_36, %c0_37] : memref<1x5x8x128xf32, #tpu.memory_space<vmem>>, vector<1x1x8x128xf32>
    %45 = vector.shape_cast %44 : vector<1x1x8x128xf32> to vector<8x128xf32>
    %c0_38 = arith.constant 0 : index
    %c4 = arith.constant 4 : index
    %c0_39 = arith.constant 0 : index
    %c0_40 = arith.constant 0 : index
    %46 = vector.load %arg5[%c0_38, %c4, %c0_39, %c0_40] : memref<1x5x8x128xf32, #tpu.memory_space<vmem>>, vector<1x1x8x128xf32>
    %47 = vector.shape_cast %46 : vector<1x1x8x128xf32> to vector<8x128xf32>
    %c0_41 = arith.constant 0 : index
    %c0_42 = arith.constant 0 : index
    %c0_43 = arith.constant 0 : index
    %c0_44 = arith.constant 0 : index
    %48 = vector.load %arg3[%c0_41, %c0_42, %c0_43, %c0_44] : memref<1x5x8x128xf32, #tpu.memory_space<vmem>>, vector<1x1x8x128xf32>
    %49 = vector.shape_cast %48 : vector<1x1x8x128xf32> to vector<8x128xf32>
    %c0_45 = arith.constant 0 : index
    %c1_46 = arith.constant 1 : index
    %c0_47 = arith.constant 0 : index
    %c0_48 = arith.constant 0 : index
    %50 = vector.load %arg3[%c0_45, %c1_46, %c0_47, %c0_48] : memref<1x5x8x128xf32, #tpu.memory_space<vmem>>, vector<1x1x8x128xf32>
    %51 = vector.shape_cast %50 : vector<1x1x8x128xf32> to vector<8x128xf32>
    %c0_49 = arith.constant 0 : index
    %c2_50 = arith.constant 2 : index
    %c0_51 = arith.constant 0 : index
    %c0_52 = arith.constant 0 : index
    %52 = vector.load %arg3[%c0_49, %c2_50, %c0_51, %c0_52] : memref<1x5x8x128xf32, #tpu.memory_space<vmem>>, vector<1x1x8x128xf32>
    %53 = vector.shape_cast %52 : vector<1x1x8x128xf32> to vector<8x128xf32>
    %c0_53 = arith.constant 0 : index
    %c3_54 = arith.constant 3 : index
    %c0_55 = arith.constant 0 : index
    %c0_56 = arith.constant 0 : index
    %54 = vector.load %arg3[%c0_53, %c3_54, %c0_55, %c0_56] : memref<1x5x8x128xf32, #tpu.memory_space<vmem>>, vector<1x1x8x128xf32>
    %55 = vector.shape_cast %54 : vector<1x1x8x128xf32> to vector<8x128xf32>
    %c0_57 = arith.constant 0 : index
    %c4_58 = arith.constant 4 : index
    %c0_59 = arith.constant 0 : index
    %c0_60 = arith.constant 0 : index
    %56 = vector.load %arg3[%c0_57, %c4_58, %c0_59, %c0_60] : memref<1x5x8x128xf32, #tpu.memory_space<vmem>>, vector<1x1x8x128xf32>
    %57 = vector.shape_cast %56 : vector<1x1x8x128xf32> to vector<8x128xf32>
    %58 = arith.addf %39, %41 : vector<8x128xf32>
    %59 = arith.addf %43, %45 : vector<8x128xf32>
    %60 = arith.mulf %58, %59 : vector<8x128xf32>
    %61 = arith.addf %49, %51 : vector<8x128xf32>
    %62 = arith.addf %53, %55 : vector<8x128xf32>
    %63 = arith.mulf %61, %62 : vector<8x128xf32>
    %64 = arith.minimumf %43, %53 : vector<8x128xf32>
    %65 = arith.minimumf %45, %55 : vector<8x128xf32>
    %66 = arith.addf %64, %65 : vector<8x128xf32>
    %67 = arith.minimumf %39, %49 : vector<8x128xf32>
    %68 = arith.minimumf %41, %51 : vector<8x128xf32>
    %69 = arith.addf %67, %68 : vector<8x128xf32>
    %70 = arith.mulf %66, %69 : vector<8x128xf32>
    %71 = arith.addf %60, %63 : vector<8x128xf32>
    %72 = arith.subf %71, %70 : vector<8x128xf32>
    %cst_61 = arith.constant 1.000000e+00 : f32
    %73 = vector.broadcast %cst_61 : f32 to vector<8x128xf32>
    %74 = arith.addf %72, %73 : vector<8x128xf32>
    %75 = math.log %74 : vector<8x128xf32>
    %cst_62 = arith.constant 1.000000e+00 : f32
    %76 = vector.broadcast %cst_62 : f32 to vector<8x128xf32>
    %77 = arith.addf %70, %76 : vector<8x128xf32>
    %78 = math.log %77 : vector<8x128xf32>
    %79 = arith.subf %75, %78 : vector<8x128xf32>
    %80 = arith.subf %57, %47 : vector<8x128xf32>
    %81 = math.cos %80 : vector<8x128xf32>
    %cst_63 = arith.constant 1.000000e+00 : f32
    %82 = vector.broadcast %cst_63 : f32 to vector<8x128xf32>
    %83 = arith.subf %82, %81 : vector<8x128xf32>
    %84 = vector.shape_cast %4 : vector<8x128xf32> to vector<1x8x128xf32>
    %cst_64 = arith.constant dense<0.000000e+00> : vector<1xf32>
    %85 = vector.multi_reduction <add>, %84, %cst_64 [1, 2] : vector<1x8x128xf32> to vector<1xf32>
    %86 = vector.shape_cast %85 : vector<1xf32> to vector<1x1x1xf32>
    %87 = vector.extract %86[0, 0, 0] : f32 from vector<1x1x1xf32>
    %88 = arith.mulf %83, %4 : vector<8x128xf32>
    %89 = vector.shape_cast %88 : vector<8x128xf32> to vector<1x8x128xf32>
    %cst_65 = arith.constant dense<0.000000e+00> : vector<1xf32>
    %90 = vector.multi_reduction <add>, %89, %cst_65 [1, 2] : vector<1x8x128xf32> to vector<1xf32>
    %91 = vector.shape_cast %90 : vector<1xf32> to vector<1x1x1xf32>
    %92 = vector.extract %91[0, 0, 0] : f32 from vector<1x1x1xf32>
    %93 = arith.mulf %79, %4 : vector<8x128xf32>
    %94 = vector.shape_cast %93 : vector<8x128xf32> to vector<1x8x128xf32>
    %cst_66 = arith.constant dense<0.000000e+00> : vector<1xf32>
    %95 = vector.multi_reduction <add>, %94, %cst_66 [1, 2] : vector<1x8x128xf32> to vector<1xf32>
    %96 = vector.shape_cast %95 : vector<1xf32> to vector<1x1x1xf32>
    %97 = vector.extract %96[0, 0, 0] : f32 from vector<1x1x1xf32>
    %98 = vector.shape_cast %11 : vector<8x128xf32> to vector<1x8x128xf32>
    %cst_67 = arith.constant dense<0.000000e+00> : vector<1xf32>
    %99 = vector.multi_reduction <add>, %98, %cst_67 [1, 2] : vector<1x8x128xf32> to vector<1xf32>
    %100 = vector.shape_cast %99 : vector<1xf32> to vector<1x1x1xf32>
    %101 = vector.extract %100[0, 0, 0] : f32 from vector<1x1x1xf32>
    %102 = vector.shape_cast %14 : vector<8x128xf32> to vector<1x8x128xf32>
    %cst_68 = arith.constant dense<0.000000e+00> : vector<1xf32>
    %103 = vector.multi_reduction <add>, %102, %cst_68 [1, 2] : vector<1x8x128xf32> to vector<1xf32>
    %104 = vector.shape_cast %103 : vector<1xf32> to vector<1x1x1xf32>
    %105 = vector.extract %104[0, 0, 0] : f32 from vector<1x1x1xf32>
    %106 = arith.mulf %29, %11 : vector<8x128xf32>
    %107 = vector.shape_cast %106 : vector<8x128xf32> to vector<1x8x128xf32>
    %cst_69 = arith.constant dense<0.000000e+00> : vector<1xf32>
    %108 = vector.multi_reduction <add>, %107, %cst_69 [1, 2] : vector<1x8x128xf32> to vector<1xf32>
    %109 = vector.shape_cast %108 : vector<1xf32> to vector<1x1x1xf32>
    %110 = vector.extract %109[0, 0, 0] : f32 from vector<1x1x1xf32>
    %111 = tpu.iota {dimensions = array<i32: 0>} : vector<8x128xi32>
    %cst_70 = arith.constant 0.000000e+00 : f32
    %112 = vector.broadcast %cst_70 : f32 to vector<8x128xf32>
    %c0_i32_71 = arith.constant 0 : i32
    %113 = vector.broadcast %c0_i32_71 : i32 to vector<8x128xi32>
    %114 = arith.cmpi eq, %111, %113 : vector<8x128xi32>
    %cst_72 = arith.constant 0.000000e+00 : f32
    %115 = vector.broadcast %87 : f32 to vector<8x128xf32>
    %116 = vector.broadcast %cst_72 : f32 to vector<8x128xf32>
    %117 = arith.select %114, %115, %116 : vector<8x128xi1>, vector<8x128xf32>
    %118 = arith.addf %112, %117 : vector<8x128xf32>
    %c1_i32 = arith.constant 1 : i32
    %119 = vector.broadcast %c1_i32 : i32 to vector<8x128xi32>
    %120 = arith.cmpi eq, %111, %119 : vector<8x128xi32>
    %cst_73 = arith.constant 0.000000e+00 : f32
    %121 = vector.broadcast %92 : f32 to vector<8x128xf32>
    %122 = vector.broadcast %cst_73 : f32 to vector<8x128xf32>
    %123 = arith.select %120, %121, %122 : vector<8x128xi1>, vector<8x128xf32>
    %124 = arith.addf %118, %123 : vector<8x128xf32>
    %c2_i32 = arith.constant 2 : i32
    %125 = vector.broadcast %c2_i32 : i32 to vector<8x128xi32>
    %126 = arith.cmpi eq, %111, %125 : vector<8x128xi32>
    %cst_74 = arith.constant 0.000000e+00 : f32
    %127 = vector.broadcast %97 : f32 to vector<8x128xf32>
    %128 = vector.broadcast %cst_74 : f32 to vector<8x128xf32>
    %129 = arith.select %126, %127, %128 : vector<8x128xi1>, vector<8x128xf32>
    %130 = arith.addf %124, %129 : vector<8x128xf32>
    %c3_i32 = arith.constant 3 : i32
    %131 = vector.broadcast %c3_i32 : i32 to vector<8x128xi32>
    %132 = arith.cmpi eq, %111, %131 : vector<8x128xi32>
    %cst_75 = arith.constant 0.000000e+00 : f32
    %133 = vector.broadcast %101 : f32 to vector<8x128xf32>
    %134 = vector.broadcast %cst_75 : f32 to vector<8x128xf32>
    %135 = arith.select %132, %133, %134 : vector<8x128xi1>, vector<8x128xf32>
    %136 = arith.addf %130, %135 : vector<8x128xf32>
    %c4_i32 = arith.constant 4 : i32
    %137 = vector.broadcast %c4_i32 : i32 to vector<8x128xi32>
    %138 = arith.cmpi eq, %111, %137 : vector<8x128xi32>
    %cst_76 = arith.constant 0.000000e+00 : f32
    %139 = vector.broadcast %105 : f32 to vector<8x128xf32>
    %140 = vector.broadcast %cst_76 : f32 to vector<8x128xf32>
    %141 = arith.select %138, %139, %140 : vector<8x128xi1>, vector<8x128xf32>
    %142 = arith.addf %136, %141 : vector<8x128xf32>
    %c5_i32 = arith.constant 5 : i32
    %143 = vector.broadcast %c5_i32 : i32 to vector<8x128xi32>
    %144 = arith.cmpi eq, %111, %143 : vector<8x128xi32>
    %cst_77 = arith.constant 0.000000e+00 : f32
    %145 = vector.broadcast %110 : f32 to vector<8x128xf32>
    %146 = vector.broadcast %cst_77 : f32 to vector<8x128xf32>
    %147 = arith.select %144, %145, %146 : vector<8x128xi1>, vector<8x128xf32>
    %148 = arith.addf %142, %147 : vector<8x128xf32>
    %c0_78 = arith.constant 0 : index
    %c0_79 = arith.constant 0 : index
    %149 = vector.load %arg9[%c0_78, %c0_79] : memref<8x128xf32, #tpu.memory_space<vmem>>, vector<8x128xf32>
    %150 = arith.addf %149, %148 : vector<8x128xf32>
    %c0_80 = arith.constant 0 : index
    %c0_81 = arith.constant 0 : index
    %151 = vector.load %arg9[%c0_80, %c0_81] : memref<8x128xf32, #tpu.memory_space<vmem>>, vector<8x128xf32>
    tpu.vector_store %arg9[%c0_80, %c0_81], %150 {strides = array<i32>} : memref<8x128xf32, #tpu.memory_space<vmem>>, vector<8x128xf32>,
    %c0_i32_82 = arith.constant 0 : i32
    %152 = arith.cmpi eq, %arg1, %c0_i32_82 : i32
    %153 = arith.extui %152 : i1 to i32
    %c0_i32_83 = arith.constant 0 : i32
    %154 = arith.cmpi ne, %153, %c0_i32_83 : i32
    scf.if %154 {
      %c0_84 = arith.constant 0 : index
      %c0_85 = arith.constant 0 : index
      %155 = vector.load %arg9[%c0_84, %c0_85] : memref<8x128xf32, #tpu.memory_space<vmem>>, vector<8x128xf32>
      %c0_86 = arith.constant 0 : index
      %c0_87 = arith.constant 0 : index
      %c0_88 = arith.constant 0 : index
      %156 = vector.load %arg8[%c0_86, %c0_87, %c0_88] : memref<1x8x128xf32, #tpu.memory_space<vmem>>, vector<1x8x128xf32>
      %157 = vector.shape_cast %156 : vector<1x8x128xf32> to vector<8x128xf32>
      %158 = vector.shape_cast %155 : vector<8x128xf32> to vector<1x8x128xf32>
      tpu.vector_store %arg8[%c0_86, %c0_87, %c0_88], %158 {strides = array<i32>} : memref<1x8x128xf32, #tpu.memory_space<vmem>>, vector<1x8x128xf32>,
    } else {
    }
    return
  }
  func.func @transform_0(%arg0: i32, %arg1: i32) -> (i32, i32, i32, i32) {
    %c0_i32 = arith.constant 0 : i32
    %c0_i32_0 = arith.constant 0 : i32
    %c0_i32_1 = arith.constant 0 : i32
    return %arg0, %c0_i32, %arg1, %c0_i32_0 : i32, i32, i32, i32
  }
  func.func @transform_1(%arg0: i32, %arg1: i32) -> (i32, i32, i32, i32) {
    %c0_i32 = arith.constant 0 : i32
    %c0_i32_0 = arith.constant 0 : i32
    %c0_i32_1 = arith.constant 0 : i32
    return %arg0, %c0_i32, %arg1, %c0_i32_0 : i32, i32, i32, i32
  }
  func.func @transform_2(%arg0: i32, %arg1: i32) -> (i32, i32, i32, i32) {
    %c0_i32 = arith.constant 0 : i32
    %c0_i32_0 = arith.constant 0 : i32
    %c0_i32_1 = arith.constant 0 : i32
    return %arg0, %c0_i32, %arg1, %c0_i32_0 : i32, i32, i32, i32
  }
  func.func @transform_3(%arg0: i32, %arg1: i32) -> (i32, i32, i32, i32) {
    %c0_i32 = arith.constant 0 : i32
    %c0_i32_0 = arith.constant 0 : i32
    %c0_i32_1 = arith.constant 0 : i32
    return %arg0, %c0_i32, %arg1, %c0_i32_0 : i32, i32, i32, i32
  }
  func.func @transform_4(%arg0: i32, %arg1: i32) -> (i32, i32, i32, i32) {
    %c0_i32 = arith.constant 0 : i32
    %c0_i32_0 = arith.constant 0 : i32
    %c0_i32_1 = arith.constant 0 : i32
    return %arg0, %c0_i32, %arg1, %c0_i32_0 : i32, i32, i32, i32
  }
  func.func @transform_5(%arg0: i32, %arg1: i32) -> (i32, i32, i32) {
    %c0_i32 = arith.constant 0 : i32
    %c0_i32_0 = arith.constant 0 : i32
    return %arg0, %arg1, %c0_i32 : i32, i32, i32
  }
  func.func @transform_6(%arg0: i32, %arg1: i32) -> (i32, i32, i32) {
    %c0_i32 = arith.constant 0 : i32
    %c0_i32_0 = arith.constant 0 : i32
    %c0_i32_1 = arith.constant 0 : i32
    return %arg0, %c0_i32, %c0_i32_0 : i32, i32, i32
  }
}

</mosaic_0001>

<llo_original>
// kernel: tpu_custom_call.1
$region0: #{tpu_custom_call.1}
  #allocation0 [shape = 'u32[]', space=smem, size = 0x4, offset = 0x4, fixed_abs, tag = 'smem constant byte address 0x4 - core index']
  #allocation1 [shape = 'u32[72,128]{1,0:T(1,128)}', space=vmem, size = 0x9000, scoped, tag = 'internal scratch']
  #allocation2 [shape = 'f32[8,128]{1,0:T(8,128)}', space=vmem, size = 0x1000, scoped, tag = 'scratch operand']
  %s0 = inlined_call_operand.hbm [shape: f32[2,2,8,128], index: 0, kind: input, shape index: {}]
  %s1 = inlined_call_operand.hbm [shape: f32[2,5,8,128], index: 1, kind: input, shape index: {}]
  %s2 = inlined_call_operand.hbm [shape: f32[2,1,8,128], index: 2, kind: input, shape index: {}]
  %s3 = inlined_call_operand.hbm [shape: f32[2,5,8,128], index: 3, kind: input, shape index: {}]
  %s4 = inlined_call_operand.hbm [shape: f32[2,1,8,128], index: 4, kind: input, shape index: {}]
  %s5 = inlined_call_operand.hbm [shape: f32[2,8,128], index: 5, kind: output, shape index: {0}]
  %s6 = inlined_call_operand.hbm [shape: f32[2,8,128], index: 6, kind: output, shape index: {1}]
  %7 = xla_tuple %s5, %s6
  %s8 = sld [smem:[#allocation0]]
  $region89: #{tpu_custom_call.1} parent=0
    _
  %s10 = ssub.s32 1, %s8
  %s11 = scalar_select 0, %s10, %s8
  $region1: #{tpu_custom_call.1} parent=0
    #allocation3 [shape = 'u8[16384]{0}', space=vmem, size = 0x4000, scoped, tag = 'input window, operand 0']
    #allocation4 [shape = 's32[2]{0}', space=sflag, size = 0x8, scoped, tag = 'scoped memory for tpu_custom_call.1']
    #allocation5 [shape = 's32[2]{0}', space=sflag, size = 0x8, scoped, tag = 'scoped memory for tpu_custom_call.1']
    #allocation6 [shape = 'u8[40960]{0}', space=vmem, size = 0xa000, scoped, tag = 'input window, operand 1']
    #allocation7 [shape = 's32[2]{0}', space=sflag, size = 0x8, scoped, tag = 'scoped memory for tpu_custom_call.1']
    #allocation8 [shape = 'u8[8192]{0}', space=vmem, size = 0x2000, scoped, tag = 'input window, operand 2']
    #allocation9 [shape = 'u8[40960]{0}', space=vmem, size = 0xa000, scoped, tag = 'input window, operand 3']
    #allocation10 [shape = 's32[2]{0}', space=sflag, size = 0x8, scoped, tag = 'scoped memory for tpu_custom_call.1']
    #allocation11 [shape = 'u8[8192]{0}', space=vmem, size = 0x2000, scoped, tag = 'input window, operand 4']
    #allocation12 [shape = 'u8[8192]{0}', space=vmem, size = 0x2000, scoped, tag = 'output window, operand 0']
    #allocation13 [shape = 'u8[8192]{0}', space=vmem, size = 0x2000, scoped, tag = 'output window, operand 1']
    #allocation14 [shape = 's32[2]{0}', space=sflag, size = 0x8, scoped, tag = 'scoped memory for tpu_custom_call.1']
    %12 = vsyncpa [#allocation4], 0
    %s13 = scalar_lea.sflag [#allocation4], 1
    %14 = vsyncpa %s13, 0
    %15 = vsyncpa [#allocation7], 0
    %s16 = scalar_lea.sflag [#allocation7], 1
    %17 = vsyncpa %s16, 0
    %18 = vsyncpa [#allocation10], 0
    %s19 = scalar_lea.sflag [#allocation10], 1
    %20 = vsyncpa %s19, 0
    %21 = vsyncpa [#allocation5], 0
    %s22 = scalar_lea.sflag [#allocation5], 1
    %23 = vsyncpa %s22, 0
    %24 = vsyncpa [#allocation14], 0
    %s25 = scalar_lea.sflag [#allocation14], 1
    %26 = vsyncpa %s25, 0
    loop: start=0, step=1, limit=4
    $region2: #{tpu_custom_call.1} parent=1 // loop_pre_header
      _
    $region3: #{tpu_custom_call.1} parent=1 // loop_header
      %s28 = sphi 0, %s32
      %p29 = scmp.ge.s32.totalorder %s28, 4
      %s35 = sphi 0, %s47
      %s36 = sphi 0, %s43
      %s37 = sphi 0, %s35
      %s38 = sphi 0, %s36
      %s39 = sphi 0, %s37
      %s40 = sphi 0, %s38
      %s52 = sphi 0, %s54
      %s55 = sphi 0, %s52
      %s56 = sphi 0, %s55
      %s72 = sphi 0, %s56
      %s80 = sphi 0, %s82
      %s83 = sphi 0, %s80
      %s84 = sphi 0, %s83
      %s100 = sphi 0, %s84
      %s108 = sphi 0, %s110
      %s111 = sphi 0, %s108
      %s112 = sphi 0, %s111
      %s128 = sphi 0, %s112
      %s136 = sphi 0, %s138
      %s139 = sphi 0, %s136
      %s140 = sphi 0, %s139
      %s156 = sphi 0, %s140
      %s164 = sphi 0, %s166
      %s167 = sphi 0, %s164
      %s168 = sphi 0, %s167
      %s184 = sphi 0, %s168
      %s192 = sphi 0, %s194
      %s195 = sphi 0, %s192
      %s196 = sphi 0, %s195
      %s212 = sphi 0, %s196
      %s218 = sphi 0, %s220
      %s221 = sphi 0, %s218
      %s222 = sphi 0, %s221
      %s238 = sphi 0, %s222
    $region4: #{tpu_custom_call.1} parent=1 // loop_header_branch
      %31 = sbr.rel (%p29) target = $region8
    $region5: #{tpu_custom_call.1} parent=1 // loop_body
      %s33 = ssub.s32 %s28, 1
      %s34 = ssub.s32 %s28, 2
      %s41 = sadd.s32 1, %s36
      %p42 = scmp.ge.s32.totalorder %s41, 1
      %s43 = scalar_select %p42, 0, %s41
      %s44 = sadd.s32 1, %s35
      %s45 = scalar_select %p42, %s44, %s35
      %p46 = scmp.ge.s32.totalorder %s45, 2
      %s47 = scalar_select %p46, 0, %s45
      %s48 = ssub.s32 %s35, %s47
      %s49 = ssub.s32 %s36, %s43
      %s50 = sor.u32 %s48, %s49
      %p51 = scmp.eq.s32.totalorder %s50, 0
      %s53 = sadd.s32 %s52, 1
      %s54 = scalar_select %p51, %s52, %s53
      %p57 = pneg %p51
      %p58 = scmp.eq.s32.totalorder %s28, 1
      %p59 = por %p57, %p58
      %p60 = scmp.ne.s32.totalorder %s52, %s55
      %p61 = scmp.eq.s32.totalorder %s28, 0
      %p62 = por %p60, %p61
      %p63 = scmp.ne.s32.totalorder %s52, %s55
      %p64 = scmp.eq.s32.totalorder %s33, 1
      %p65 = por %p63, %p64
      %p66 = scmp.ne.s32.totalorder %s55, %s56
      %p67 = scmp.eq.s32.totalorder %s33, 0
      %p68 = por %p66, %p67
      %p69 = scmp.ne.s32.totalorder %s55, %s56
      %p70 = scmp.eq.s32.totalorder %s34, 1
      %p71 = por %p69, %p70
      %p73 = scmp.ne.s32.totalorder %s56, %s72
      %p74 = scmp.eq.s32.totalorder %s34, 0
      %p75 = por %p73, %p74
      %s76 = ssub.s32 %s35, %s47
      %s77 = ssub.s32 %s36, %s43
      %s78 = sor.u32 %s76, %s77
      %p79 = scmp.eq.s32.totalorder %s78, 0
      %s81 = sadd.s32 %s80, 1
      %s82 = scalar_select %p79, %s80, %s81
      %p85 = pneg %p79
      %p86 = scmp.eq.s32.totalorder %s28, 1
      %p87 = por %p85, %p86
      %p88 = scmp.ne.s32.totalorder %s80, %s83
      %p89 = scmp.eq.s32.totalorder %s28, 0
      %p90 = por %p88, %p89
      %p91 = scmp.ne.s32.totalorder %s80, %s83
      %p92 = scmp.eq.s32.totalorder %s33, 1
      %p93 = por %p91, %p92
      %p94 = scmp.ne.s32.totalorder %s83, %s84
      %p95 = scmp.eq.s32.totalorder %s33, 0
      %p96 = por %p94, %p95
      %p97 = scmp.ne.s32.totalorder %s83, %s84
      %p98 = scmp.eq.s32.totalorder %s34, 1
      %p99 = por %p97, %p98
      %p101 = scmp.ne.s32.totalorder %s84, %s100
      %p102 = scmp.eq.s32.totalorder %s34, 0
      %p103 = por %p101, %p102
      %s104 = ssub.s32 %s35, %s47
      %s105 = ssub.s32 %s36, %s43
      %s106 = sor.u32 %s104, %s105
      %p107 = scmp.eq.s32.totalorder %s106, 0
      %s109 = sadd.s32 %s108, 1
      %s110 = scalar_select %p107, %s108, %s109
      %p113 = pneg %p107
      %p114 = scmp.eq.s32.totalorder %s28, 1
      %p115 = por %p113, %p114
      %p116 = scmp.ne.s32.totalorder %s108, %s111
      %p117 = scmp.eq.s32.totalorder %s28, 0
      %p118 = por %p116, %p117
      %p119 = scmp.ne.s32.totalorder %s108, %s111
      %p120 = scmp.eq.s32.totalorder %s33, 1
      %p121 = por %p119, %p120
      %p122 = scmp.ne.s32.totalorder %s111, %s112
      %p123 = scmp.eq.s32.totalorder %s33, 0
      %p124 = por %p122, %p123
      %p125 = scmp.ne.s32.totalorder %s111, %s112
      %p126 = scmp.eq.s32.totalorder %s34, 1
      %p127 = por %p125, %p126
      %p129 = scmp.ne.s32.totalorder %s112, %s128
      %p130 = scmp.eq.s32.totalorder %s34, 0
      %p131 = por %p129, %p130
      %s132 = ssub.s32 %s35, %s47
      %s133 = ssub.s32 %s36, %s43
      %s134 = sor.u32 %s132, %s133
      %p135 = scmp.eq.s32.totalorder %s134, 0
      %s137 = sadd.s32 %s136, 1
      %s138 = scalar_select %p135, %s136, %s137
      %p141 = pneg %p135
      %p142 = scmp.eq.s32.totalorder %s28, 1
      %p143 = por %p141, %p142
      %p144 = scmp.ne.s32.totalorder %s136, %s139
      %p145 = scmp.eq.s32.totalorder %s28, 0
      %p146 = por %p144, %p145
      %p147 = scmp.ne.s32.totalorder %s136, %s139
      %p148 = scmp.eq.s32.totalorder %s33, 1
      %p149 = por %p147, %p148
      %p150 = scmp.ne.s32.totalorder %s139, %s140
      %p151 = scmp.eq.s32.totalorder %s33, 0
      %p152 = por %p150, %p151
      %p153 = scmp.ne.s32.totalorder %s139, %s140
      %p154 = scmp.eq.s32.totalorder %s34, 1
      %p155 = por %p153, %p154
      %p157 = scmp.ne.s32.totalorder %s140, %s156
      %p158 = scmp.eq.s32.totalorder %s34, 0
      %p159 = por %p157, %p158
      %s160 = ssub.s32 %s35, %s47
      %s161 = ssub.s32 %s36, %s43
      %s162 = sor.u32 %s160, %s161
      %p163 = scmp.eq.s32.totalorder %s162, 0
      %s165 = sadd.s32 %s164, 1
      %s166 = scalar_select %p163, %s164, %s165
      %p169 = pneg %p163
      %p170 = scmp.eq.s32.totalorder %s28, 1
      %p171 = por %p169, %p170
      %p172 = scmp.ne.s32.totalorder %s164, %s167
      %p173 = scmp.eq.s32.totalorder %s28, 0
      %p174 = por %p172, %p173
      %p175 = scmp.ne.s32.totalorder %s164, %s167
      %p176 = scmp.eq.s32.totalorder %s33, 1
      %p177 = por %p175, %p176
      %p178 = scmp.ne.s32.totalorder %s167, %s168
      %p179 = scmp.eq.s32.totalorder %s33, 0
      %p180 = por %p178, %p179
      %p181 = scmp.ne.s32.totalorder %s167, %s168
      %p182 = scmp.eq.s32.totalorder %s34, 1
      %p183 = por %p181, %p182
      %p185 = scmp.ne.s32.totalorder %s168, %s184
      %p186 = scmp.eq.s32.totalorder %s34, 0
      %p187 = por %p185, %p186
      %s188 = ssub.s32 %s35, %s47
      %s189 = ssub.s32 %s36, %s43
      %s190 = sor.u32 %s188, %s189
      %p191 = scmp.eq.s32.totalorder %s190, 0
      %s193 = sadd.s32 %s192, 1
      %s194 = scalar_select %p191, %s192, %s193
      %p197 = pneg %p191
      %p198 = scmp.eq.s32.totalorder %s28, 1
      %p199 = por %p197, %p198
      %p200 = scmp.ne.s32.totalorder %s192, %s195
      %p201 = scmp.eq.s32.totalorder %s28, 0
      %p202 = por %p200, %p201
      %p203 = scmp.ne.s32.totalorder %s192, %s195
      %p204 = scmp.eq.s32.totalorder %s33, 1
      %p205 = por %p203, %p204
      %p206 = scmp.ne.s32.totalorder %s195, %s196
      %p207 = scmp.eq.s32.totalorder %s33, 0
      %p208 = por %p206, %p207
      %p209 = scmp.ne.s32.totalorder %s195, %s196
      %p210 = scmp.eq.s32.totalorder %s34, 1
      %p211 = por %p209, %p210
      %p213 = scmp.ne.s32.totalorder %s196, %s212
      %p214 = scmp.eq.s32.totalorder %s34, 0
      %p215 = por %p213, %p214
      %s216 = ssub.s32 %s35, %s47
      %p217 = scmp.eq.s32.totalorder %s216, 0
      %s219 = sadd.s32 %s218, 1
      %s220 = scalar_select %p217, %s218, %s219
      %p223 = pneg %p217
      %p224 = scmp.eq.s32.totalorder %s28, 1
      %p225 = por %p223, %p224
      %p226 = scmp.ne.s32.totalorder %s218, %s221
      %p227 = scmp.eq.s32.totalorder %s28, 0
      %p228 = por %p226, %p227
      %p229 = scmp.ne.s32.totalorder %s218, %s221
      %p230 = scmp.eq.s32.totalorder %s33, 1
      %p231 = por %p229, %p230
      %p232 = scmp.ne.s32.totalorder %s221, %s222
      %p233 = scmp.eq.s32.totalorder %s33, 0
      %p234 = por %p232, %p233
      %p235 = scmp.ne.s32.totalorder %s221, %s222
      %p236 = scmp.eq.s32.totalorder %s34, 1
      %p237 = por %p235, %p236
      %p239 = scmp.ne.s32.totalorder %s222, %s238
      %p240 = scmp.eq.s32.totalorder %s34, 0
      %p241 = por %p239, %p240
      %p242 = scmp.le.s32.totalorder 1, %s28
      %p243 = scmp.lt.s32.totalorder %s28, 3
      %p244 = pnand %p242, %p243
      %p245 = pneg %p244
      // Predicated region
      $region9: #{tpu_custom_call.1} parent=5 // pred_check
        _
      $region10: #{tpu_custom_call.1} parent=5 // pred_check_branch
        %247 = sbr.rel (%p244) target = $region12
      $region11: #{tpu_custom_call.1} parent=5 // pred_region
        %s248 = ssub.s32 %s28, 1
      $region12: #{tpu_custom_call.1} parent=5 // pred_fallthru
        _
      %p249 = scmp.lt.s32.totalorder %s28, 2
      // Predicated region
      $region13: #{tpu_custom_call.1} parent=5 // pred_check
        %p250 = pneg %p249
      $region14: #{tpu_custom_call.1} parent=5 // pred_check_branch
        %252 = sbr.rel (%p250) target = $region16
      $region15: #{tpu_custom_call.1} parent=5 // pred_region
        // Predicated region
        $region17: #{tpu_custom_call.1} parent=15 // pred_check
          %p253 = pneg %p62
        $region18: #{tpu_custom_call.1} parent=15 // pred_check_branch
          %255 = sbr.rel (%p253) target = $region20
        $region19: #{tpu_custom_call.1} parent=15 // pred_region
          %s256 = sand.u32 %s52, 1
          %s257 = scalar_lea.sflag [#allocation4], %s256
          %s258 = sand.u32 %s52, 1
          %s259 = smul.addr %s258, 16
          %s260 = scalar_lea.vmem [#allocation3], %s259
          %262 = vsyncadd %s257, 0
          %s263 = smul.addr %s35, 2
          %s264 = sadd.s32 %s36, %s263
          %s265 = smul.addr %s264, 8
          %s266 = scalar_lea.hbm %s0, %s265
          %s267 = sshll.u32 %s266, 4
          %s268 = int_to_ptr.hbm [resolvable:$true] %s267
          %s269 = sshll.u32 %s260, 4
          %s270 = int_to_ptr.vmem [resolvable:$true] %s269
          %275 = dma.hbm_to_vmem [thread:$0]  %s268, 256, %s270, %s257, 128, 128, 8
        $region20: #{tpu_custom_call.1} parent=15 // pred_fallthru
          _
        // Predicated region
        $region21: #{tpu_custom_call.1} parent=15 // pred_check
          %p276 = pneg %p90
        $region22: #{tpu_custom_call.1} parent=15 // pred_check_branch
          %278 = sbr.rel (%p276) target = $region24
        $region23: #{tpu_custom_call.1} parent=15 // pred_region
          %s279 = sand.u32 %s28, 1
          %s280 = scalar_lea.sflag [#allocation7], %s279
          %s281 = sand.u32 %s80, 1
          %s282 = smul.addr %s281, 40
          %s283 = scalar_lea.vmem [#allocation6], %s282
          %285 = vsyncadd %s280, 0
          %s286 = smul.addr %s35, 5
          %s287 = sadd.s32 %s36, %s286
          %s288 = smul.addr %s287, 8
          %s289 = scalar_lea.hbm %s1, %s288
          %s290 = sshll.u32 %s289, 4
          %s291 = int_to_ptr.hbm [resolvable:$true] %s290
          %s292 = sshll.u32 %s283, 4
          %s293 = int_to_ptr.vmem [resolvable:$true] %s292
          %298 = dma.hbm_to_vmem [thread:$0]  %s291, 640, %s293, %s280, 128, 128, 8
        $region24: #{tpu_custom_call.1} parent=15 // pred_fallthru
          _
        // Predicated region
        $region25: #{tpu_custom_call.1} parent=15 // pred_check
          %p299 = pneg %p118
        $region26: #{tpu_custom_call.1} parent=15 // pred_check_branch
          %301 = sbr.rel (%p299) target = $region28
        $region27: #{tpu_custom_call.1} parent=15 // pred_region
          %s302 = sand.u32 %s28, 1
          %s303 = scalar_lea.sflag [#allocation7], %s302
          %s304 = sand.u32 %s108, 1
          %s305 = smul.addr %s304, 8
          %s306 = scalar_lea.vmem [#allocation8], %s305
          %308 = vsyncadd %s303, 0
          %s309 = sadd.s32 %s36, %s35
          %s310 = smul.addr %s309, 8
          %s311 = scalar_lea.hbm %s2, %s310
          %s313 = sshll.u32 %s311, 4
          %s314 = int_to_ptr.hbm [resolvable:$true] %s313
          %s315 = sshll.u32 %s306, 4
          %s316 = int_to_ptr.vmem [resolvable:$true] %s315
          %318 = dma.hbm_to_vmem [thread:$0]  %s314, 128, %s316, %s303
        $region28: #{tpu_custom_call.1} parent=15 // pred_fallthru
          _
        // Predicated region
        $region29: #{tpu_custom_call.1} parent=15 // pred_check
          %p319 = pneg %p146
        $region30: #{tpu_custom_call.1} parent=15 // pred_check_branch
          %321 = sbr.rel (%p319) target = $region32
        $region31: #{tpu_custom_call.1} parent=15 // pred_region
          %s322 = sand.u32 %s28, 1
          %s323 = scalar_lea.sflag [#allocation10], %s322
          %s324 = sand.u32 %s136, 1
          %s325 = smul.addr %s324, 40
          %s326 = scalar_lea.vmem [#allocation9], %s325
          %328 = vsyncadd %s323, 0
          %s329 = smul.addr %s35, 5
          %s330 = sadd.s32 %s36, %s329
          %s331 = smul.addr %s330, 8
          %s332 = scalar_lea.hbm %s3, %s331
          %s333 = sshll.u32 %s332, 4
          %s334 = int_to_ptr.hbm [resolvable:$true] %s333
          %s335 = sshll.u32 %s326, 4
          %s336 = int_to_ptr.vmem [resolvable:$true] %s335
          %341 = dma.hbm_to_vmem [thread:$0]  %s334, 640, %s336, %s323, 128, 128, 8
        $region32: #{tpu_custom_call.1} parent=15 // pred_fallthru
          _
        // Predicated region
        $region33: #{tpu_custom_call.1} parent=15 // pred_check
          %p342 = pneg %p174
        $region34: #{tpu_custom_call.1} parent=15 // pred_check_branch
          %344 = sbr.rel (%p342) target = $region36
        $region35: #{tpu_custom_call.1} parent=15 // pred_region
          %s345 = sand.u32 %s28, 1
          %s346 = scalar_lea.sflag [#allocation10], %s345
          %s347 = sand.u32 %s164, 1
          %s348 = smul.addr %s347, 8
          %s349 = scalar_lea.vmem [#allocation11], %s348
          %351 = vsyncadd %s346, 0
          %s352 = sadd.s32 %s36, %s35
          %s353 = smul.addr %s352, 8
          %s354 = scalar_lea.hbm %s4, %s353
          %s356 = sshll.u32 %s354, 4
          %s357 = int_to_ptr.hbm [resolvable:$true] %s356
          %s358 = sshll.u32 %s349, 4
          %s359 = int_to_ptr.vmem [resolvable:$true] %s358
          %361 = dma.hbm_to_vmem [thread:$0]  %s357, 128, %s359, %s346
        $region36: #{tpu_custom_call.1} parent=15 // pred_fallthru
          _
      $region16: #{tpu_custom_call.1} parent=5 // pred_fallthru
        _
      %p362 = scmp.le.s32.totalorder 1, %s28
      %p363 = scmp.lt.s32.totalorder %s28, 3
      %p364 = pnand %p362, %p363
      %p365 = pneg %p364
      // Predicated region
      $region37: #{tpu_custom_call.1} parent=5 // pred_check
        _
      $region38: #{tpu_custom_call.1} parent=5 // pred_check_branch
        %367 = sbr.rel (%p364) target = $region40
      $region39: #{tpu_custom_call.1} parent=5 // pred_region
        %s368 = ssub.s32 %s28, 1
        %s369 = sand.u32 %s55, 1
        %s370 = scalar_lea.sflag [#allocation4], %s369
        %s371 = sand.u32 %s55, 1
        %s372 = smul.addr %s371, 16
        %s373 = scalar_lea.vmem [#allocation3], %s372
        // Predicated region
        $region41: #{tpu_custom_call.1} parent=39 // pred_check
          %p374 = pneg %p68
        $region42: #{tpu_custom_call.1} parent=39 // pred_check_branch
          %376 = sbr.rel (%p374) target = $region44
        $region43: #{tpu_custom_call.1} parent=39 // pred_region
          %378 = dma.done %s370, 256
        $region44: #{tpu_custom_call.1} parent=39 // pred_fallthru
          _
        %s379 = sand.u32 %s33, 1
        %s380 = scalar_lea.sflag [#allocation7], %s379
        %s381 = sand.u32 %s83, 1
        %s382 = smul.addr %s381, 40
        %s383 = scalar_lea.vmem [#allocation6], %s382
        // Predicated region
        $region45: #{tpu_custom_call.1} parent=39 // pred_check
          %p384 = pneg %p96
        $region46: #{tpu_custom_call.1} parent=39 // pred_check_branch
          %386 = sbr.rel (%p384) target = $region48
        $region47: #{tpu_custom_call.1} parent=39 // pred_region
          %388 = dma.done %s380, 640
        $region48: #{tpu_custom_call.1} parent=39 // pred_fallthru
          _
        %s389 = sand.u32 %s33, 1
        %s390 = scalar_lea.sflag [#allocation7], %s389
        %s391 = sand.u32 %s111, 1
        %s392 = smul.addr %s391, 8
        %s393 = scalar_lea.vmem [#allocation8], %s392
        // Predicated region
        $region49: #{tpu_custom_call.1} parent=39 // pred_check
          %p394 = pneg %p124
        $region50: #{tpu_custom_call.1} parent=39 // pred_check_branch
          %396 = sbr.rel (%p394) target = $region52
        $region51: #{tpu_custom_call.1} parent=39 // pred_region
          %398 = dma.done %s390, 128
        $region52: #{tpu_custom_call.1} parent=39 // pred_fallthru
          _
        %s399 = sand.u32 %s33, 1
        %s400 = scalar_lea.sflag [#allocation10], %s399
        %s401 = sand.u32 %s139, 1
        %s402 = smul.addr %s401, 40
        %s403 = scalar_lea.vmem [#allocation9], %s402
        // Predicated region
        $region53: #{tpu_custom_call.1} parent=39 // pred_check
          %p404 = pneg %p152
        $region54: #{tpu_custom_call.1} parent=39 // pred_check_branch
          %406 = sbr.rel (%p404) target = $region56
        $region55: #{tpu_custom_call.1} parent=39 // pred_region
          %408 = dma.done %s400, 640
        $region56: #{tpu_custom_call.1} parent=39 // pred_fallthru
          _
        %s409 = sand.u32 %s33, 1
        %s410 = scalar_lea.sflag [#allocation10], %s409
        %s411 = sand.u32 %s167, 1
        %s412 = smul.addr %s411, 8
        %s413 = scalar_lea.vmem [#allocation11], %s412
        // Predicated region
        $region57: #{tpu_custom_call.1} parent=39 // pred_check
          %p414 = pneg %p180
        $region58: #{tpu_custom_call.1} parent=39 // pred_check_branch
          %416 = sbr.rel (%p414) target = $region60
        $region59: #{tpu_custom_call.1} parent=39 // pred_region
          %418 = dma.done %s410, 128
        $region60: #{tpu_custom_call.1} parent=39 // pred_fallthru
          _
        %s419 = sand.u32 %s55, 1
        %s420 = scalar_lea.sflag [#allocation4], %s419
        %s421 = sand.u32 %s55, 1
        %s422 = smul.addr %s421, 16
        %s423 = scalar_lea.vmem [#allocation3], %s422
        %p424 = pneg %p68
        %p425 = pneg %p65
        %s426 = sand.u32 %s33, 1
        %s427 = scalar_lea.sflag [#allocation7], %s426
        %s428 = sand.u32 %s83, 1
        %s429 = smul.addr %s428, 40
        %s430 = scalar_lea.vmem [#allocation6], %s429
        %p431 = pneg %p96
        %p432 = pneg %p93
        %s433 = sand.u32 %s33, 1
        %s434 = scalar_lea.sflag [#allocation7], %s433
        %s435 = sand.u32 %s111, 1
        %s436 = smul.addr %s435, 8
        %s437 = scalar_lea.vmem [#allocation8], %s436
        %p438 = pneg %p124
        %p439 = pneg %p121
        %s440 = sand.u32 %s33, 1
        %s441 = scalar_lea.sflag [#allocation10], %s440
        %s442 = sand.u32 %s139, 1
        %s443 = smul.addr %s442, 40
        %s444 = scalar_lea.vmem [#allocation9], %s443
        %p445 = pneg %p152
        %p446 = pneg %p149
        %s447 = sand.u32 %s33, 1
        %s448 = scalar_lea.sflag [#allocation10], %s447
        %s449 = sand.u32 %s167, 1
        %s450 = smul.addr %s449, 8
        %s451 = scalar_lea.vmem [#allocation11], %s450
        %p452 = pneg %p180
        %p453 = pneg %p177
        %p454 = pneg %p208
        %p455 = pneg %p205
        %s456 = sand.u32 %s195, 1
        %s457 = scalar_lea.sflag [#allocation5], %s456
        %s458 = sand.u32 %s195, 1
        %s459 = smul.addr %s458, 8
        %s460 = scalar_lea.vmem [#allocation12], %s459
        %p461 = pneg %p234
        %p462 = pneg %p231
        %s463 = sand.u32 %s221, 1
        %s464 = scalar_lea.sflag [#allocation14], %s463
        %s465 = sand.u32 %s221, 1
        %s466 = smul.addr %s465, 8
        %s467 = scalar_lea.vmem [#allocation13], %s466
        %p468 = scmp.eq.s32.totalorder %s38, 0
        // Predicated region
        $region61: #{tpu_custom_call.1} parent=39 // pred_check
          %p469 = pneg %p468
        $region62: #{tpu_custom_call.1} parent=39 // pred_check_branch
          %471 = sbr.rel (%p469) target = $region64
        $region63: #{tpu_custom_call.1} parent=39 // pred_region
          %472 = vst [vmem:[#allocation2] sm:$0xff] 0.0
        $region64: #{tpu_custom_call.1} parent=39 // pred_fallthru
          _
        %v473 = vld [vmem:[%s393] sm:$0xff]
        %v474 = vld [vmem:[%s413] sm:$0xff]
        %v475 = vfloor.f32 %v473
        %v476 = vsub.f32 1.0, %v474
        %v477 = vfloor.f32 %v476
        %v478 = vmul.f32 %v475, %v477
        %v479 = vsub.f32 1.0, %v475
        %v480 = vmul.f32 %v479, %v477
        %v481 = vld [vmem:[%s373] sm:$0xff]
        %s482 = scalar_lea.vmem %s373, 8 [#allocation3]
        %v483 = vld [vmem:[%s482] sm:$0xff]
        %v484 = vsub.f32 %v481, %v483
        %v485 = vmax.f32 %v484, 0.0
        %v486 = vand.u32 2147483647, %v484
        %v487 = vsub.f32 0.0, %v486
        %v488 = vmul.f32 %v487, 1.442695
        %v489 = vpow.pop %v488
        %v490 = vadd.f32 %v489, 1.0
        %v491 = vlog2.pop %v490
        %v492 = vmul.f32 %v491, 0.6931472
        %v493 = vadd.f32 %v485, %v492
        %v494 = vsub.f32 %v493, %v484
        %vm495 = vcmp.gt.f32.partialorder %v480, 0.0
        %v496 = vsel %vm495, %v494, -1.0
        %497 = vst [vmem:[%s460] sm:$0xff] %v496
        %v498 = vld [vmem:[%s403] sm:$0xff]
        %s499 = scalar_lea.vmem %s403, 8 [#allocation9]
        %v500 = vld [vmem:[%s499] sm:$0xff]
        %s501 = scalar_lea.vmem %s403, 16 [#allocation9]
        %v502 = vld [vmem:[%s501] sm:$0xff]
        %s503 = scalar_lea.vmem %s403, 24 [#allocation9]
        %v504 = vld [vmem:[%s503] sm:$0xff]
        %s505 = scalar_lea.vmem %s403, 32 [#allocation9]
        %v506 = vld [vmem:[%s505] sm:$0xff]
        %v507 = vld [vmem:[%s383] sm:$0xff]
        %s508 = scalar_lea.vmem %s383, 8 [#allocation6]
        %v509 = vld [vmem:[%s508] sm:$0xff]
        %s510 = scalar_lea.vmem %s383, 16 [#allocation6]
        %v511 = vld [vmem:[%s510] sm:$0xff]
        %s512 = scalar_lea.vmem %s383, 24 [#allocation6]
        %v513 = vld [vmem:[%s512] sm:$0xff]
        %s514 = scalar_lea.vmem %s383, 32 [#allocation6]
        %v515 = vld [vmem:[%s514] sm:$0xff]
        %v516 = vadd.f32 %v498, %v500
        %v517 = vadd.f32 %v502, %v504
        %v518 = vmul.f32 %v516, %v517
        %v519 = vadd.f32 %v507, %v509
        %v520 = vadd.f32 %v511, %v513
        %v521 = vmul.f32 %v519, %v520
        %v522 = vmin.f32 %v502, %v511
        %v523 = vmin.f32 %v504, %v513
        %v524 = vadd.f32 %v522, %v523
        %v525 = vmin.f32 %v498, %v507
        %v526 = vmin.f32 %v500, %v509
        %v527 = vadd.f32 %v525, %v526
        %v528 = vmul.f32 %v524, %v527
        %v529 = vadd.f32 %v518, %v521
        %v530 = vsub.f32 %v529, %v528
        %v531 = vadd.f32 %v530, 1.0
        %v532 = vlog2.pop %v531
        %v533 = vmul.f32 %v532, 0.6931472
        %v534 = vadd.f32 %v528, 1.0
        %v535 = vlog2.pop %v534
        %v536 = vmul.f32 %v535, 0.6931472
        %v537 = vsub.f32 %v533, %v536
        %v538 = vsub.f32 %v515, %v506
        %v539 = vand.u32 2147483647, %v538
        %vm540 = vcmp.le.f32.partialorder %v539, 0.7853982
        %vm541 = vcmp.lt.s32.totalorder %v538, 0
        %v542 = vand.u32 %v538, 2139095040
        %v543 = vshrl.u32 %v542, 23
        %v544 = vsub.s32 %v543, 127
        %v545 = vand.u32 2147483647, %v538
        %v546 = vand.u32 %v545, 8388607
        %v547 = vor.u32 %v546, 8388608
        %v548 = vsub.s32 0, %v547
        %v549 = vadd.s32 %v544, 1
        %vm550 = vcmp.gt.s32.totalorder %v549, 0
        %v551 = vsel %vm550, %v549, 0
        %v552 = vshrl.u32 %v551, 5
        %v553 = vand.u32 %v551, 31
        %v554 = vsub.s32 32, %v553
        %v555 = vshrl.u32 683565275, %v554
        %v556 = vshll.u32 683565275, %v553
        %v557 = vshrl.u32 2475754826, %v554
        %v558 = vor.u32 %v556, %v557
        %v559 = vshll.u32 2475754826, %v553
        %v560 = vshrl.u32 2131351028, %v554
        %v561 = vor.u32 %v559, %v560
        %v562 = vshll.u32 2131351028, %v553
        %v563 = vshrl.u32 2102212464, %v554
        %v564 = vor.u32 %v562, %v563
        %v565 = vshll.u32 2102212464, %v553
        %v566 = vshrl.u32 920167782, %v554
        %v567 = vor.u32 %v565, %v566
        %v568 = vshll.u32 920167782, %v553
        %v569 = vshrl.u32 1326507024, %v554
        %v570 = vor.u32 %v568, %v569
        %vm571 = vcmp.lt.s32.totalorder %v552, 1
        %vm572 = vcmp.lt.s32.totalorder %v552, 2
        %vm573 = vcmp.lt.s32.totalorder %v552, 3
        %vm574 = vcmp.lt.s32.totalorder %v552, 4
        %v575 = vsel %vm571, %v555, %v558
        %v576 = vsel %vm574, %v564, 2102212464
        %v577 = vsel %vm573, %v561, %v576
        %v578 = vsel %vm572, %v575, %v577
        %v579 = vsel %vm571, %v558, %v561
        %v580 = vsel %vm574, %v567, 920167782
        %v581 = vsel %vm573, %v564, %v580
        %v582 = vsel %vm572, %v579, %v581
        %v583 = vsel %vm571, %v561, %v564
        %v584 = vsel %vm574, %v570, 1326507024
        %v585 = vsel %vm573, %v567, %v584
        %v586 = vsel %vm572, %v583, %v585
        %v587 = vshll.u32 %v547, 8
        %v588 = vand.u32 %v587, 65535
        %v589 = vshrl.u32 %v587, 16
        %v590 = vand.u32 %v586, 65535
        %v591 = vshrl.u32 %v586, 16
        %v592 = vmul.u32 %v588, %v590
        %v593 = vmul.u32 %v588, %v591
        %v594 = vmul.u32 %v589, %v590
        %v595 = vmul.u32 %v589, %v591
        %v596 = vshll.u32 %v593, 16
        %v597 = vshrl.u32 %v593, 16
        %v598 = vshll.u32 %v594, 16
        %v599 = vshrl.u32 %v594, 16
        %vm600 = vc.u32 %v592, %v596
        %v601 = vsel %vm600, 1, 0
        %v602 = vadd.s32 %v592, %v596
        %v603 = vadd.s32 %v595, %v601
        %vm604 = vc.u32 %v602, %v598
        %v605 = vsel %vm604, 1, 0
        %v606 = vadd.s32 %v602, %v598
        %v607 = vadd.s32 %v603, %v605
        %v608 = vadd.s32 %v607, %v597
        %v609 = vadd.s32 %v608, %v599
        %v610 = vand.u32 %v587, 65535
        %v611 = vshrl.u32 %v587, 16
        %v612 = vand.u32 %v582, 65535
        %v613 = vshrl.u32 %v582, 16
        %v614 = vmul.u32 %v610, %v612
        %v615 = vmul.u32 %v610, %v613
        %v616 = vmul.u32 %v611, %v612
        %v617 = vmul.u32 %v611, %v613
        %v618 = vshll.u32 %v615, 16
        %v619 = vshrl.u32 %v615, 16
        %v620 = vshll.u32 %v616, 16
        %v621 = vshrl.u32 %v616, 16
        %vm622 = vc.u32 %v614, %v618
        %v623 = vsel %vm622, 1, 0
        %v624 = vadd.s32 %v614, %v618
        %v625 = vadd.s32 %v617, %v623
        %vm626 = vc.u32 %v624, %v620
        %v627 = vsel %vm626, 1, 0
        %v628 = vadd.s32 %v624, %v620
        %v629 = vadd.s32 %v625, %v627
        %v630 = vadd.s32 %v629, %v619
        %v631 = vadd.s32 %v630, %v621
        %v632 = vmul.u32 %v587, %v578
        %v633 = vadd.s32 %v609, %v628
        %vm634 = vc.u32 %v609, %v628
        %v635 = vadd.s32 %v631, 1
        %v636 = vsel %vm634, %v635, %v631
        %v637 = vadd.s32 %v632, %v636
        %v638 = vadd.s32 %v637, 536870912
        %v639 = vshrl.u32 %v638, 30
        %v640 = vshll.u32 %v639, 30
        %v641 = vsub.s32 %v637, %v640
        %vm642 = vcmp.lt.s32.totalorder %v641, 0
        %v643 = vsub.s32 0, %v641
        %v644 = vsel %vm642, %v643, %v641
        %v645 = vclz %v644
        %v646 = vsub.s32 %v645, 2
        %vm647 = vcmp.gt.s32.totalorder 0, %v646
        %v648 = vsel %vm647, 0, %v646
        %v649 = vsub.s32 32, %v648
        %v650 = vshll.u32 %v641, %v648
        %v651 = vshrl.u32 %v633, %v649
        %v652 = vor.u32 %v650, %v651
        %v653 = vsub.s32 4294967266, %v648
        %v654 = vadd.s32 %v653, 127
        %v655 = vshll.u32 %v654, 23
        %v656 = vor.u32 4788187, %v655
        %v657 = vand.u32 2147483647, %v656
        %v659 = vcvt.s32.f32 %v652
        %v660 = vmul.f32 %v659, %v657
        %v661 = vxor.u32 %v660, 2147483648
        %v662 = vsel %vm541, %v661, %v660
        %v663 = vsub.s32 4, %v639
        %v664 = vsel %vm541, %v663, %v639
        %v665 = vsel %vm540, %v538, %v662
        %v666 = vsel %vm540, 0, %v664
        %v667 = vmul.f32 %v665, %v665
        %v668 = vmul.f32 %v667, -0.001358992
        %v669 = vadd.f32 %v668, 0.041655596
        %v670 = vmul.f32 %v667, %v669
        %v671 = vadd.f32 %v670, -0.4999988
        %v672 = vmul.f32 %v667, %v671
        %v673 = vadd.f32 1.0, %v672
        %v674 = vmul.f32 %v665, %v665
        %v675 = vmul.f32 %v674, -0.00019511016
        %v676 = vadd.f32 %v675, 0.008332121
        %v677 = vmul.f32 %v674, %v676
        %v678 = vadd.f32 %v677, -0.16666654
        %v679 = vmul.f32 %v674, %v678
        %v680 = vadd.f32 %v679, 1.0
        %v681 = vmul.f32 %v680, %v665
        %vm682 = vweird.f32 %v538
        %v683 = vand.u32 %v666, 3
        %vm684 = vcmp.lt.s32.totalorder %v683, 2
        %vm685 = vcmp.eq.s32.totalorder %v683, 0
        %v686 = vxor.u32 %v681, 2147483648
        %v687 = vsel %vm685, %v673, %v686
        %vm688 = vcmp.eq.s32.totalorder %v683, 2
        %v689 = vxor.u32 %v673, 2147483648
        %v690 = vsel %vm688, %v689, %v681
        %v691 = vsel %vm684, %v687, %v690
        %v692 = vsel %vm682, nan, %v691
        %v693 = vsub.f32 1.0, %v692
        %694 = vadd.xlane.f32.xlu0 %v473
        %v695 = vpop.xlane.xlu0 %694
        %v696 = vrot.slane %v695, 4
        %v697 = vadd.f32 %v695, %v696
        %v698 = vrot.slane %v697, 2
        %v699 = vadd.f32 %v697, %v698
        %v700 = vrot.slane %v699, 1
        %v701 = vadd.f32 %v699, %v700
        %s702 = vtos %v701
        %v703 = vmul.f32 %v693, %v473
        %704 = vadd.xlane.f32.xlu0 %v703
        %v705 = vpop.xlane.xlu0 %704
        %v706 = vrot.slane %v705, 4
        %v707 = vadd.f32 %v705, %v706
        %v708 = vrot.slane %v707, 2
        %v709 = vadd.f32 %v707, %v708
        %v710 = vrot.slane %v709, 1
        %v711 = vadd.f32 %v709, %v710
        %s712 = vtos %v711
        %v713 = vmul.f32 %v537, %v473
        %714 = vadd.xlane.f32.xlu0 %v713
        %v715 = vpop.xlane.xlu0 %714
        %v716 = vrot.slane %v715, 4
        %v717 = vadd.f32 %v715, %v716
        %v718 = vrot.slane %v717, 2
        %v719 = vadd.f32 %v717, %v718
        %v720 = vrot.slane %v719, 1
        %v721 = vadd.f32 %v719, %v720
        %s722 = vtos %v721
        %723 = vadd.xlane.f32.xlu0 %v478
        %v724 = vpop.xlane.xlu0 %723
        %v725 = vrot.slane %v724, 4
        %v726 = vadd.f32 %v724, %v725
        %v727 = vrot.slane %v726, 2
        %v728 = vadd.f32 %v726, %v727
        %v729 = vrot.slane %v728, 1
        %v730 = vadd.f32 %v728, %v729
        %s731 = vtos %v730
        %732 = vadd.xlane.f32.xlu0 %v480
        %v733 = vpop.xlane.xlu0 %732
        %v734 = vrot.slane %v733, 4
        %v735 = vadd.f32 %v733, %v734
        %v736 = vrot.slane %v735, 2
        %v737 = vadd.f32 %v735, %v736
        %v738 = vrot.slane %v737, 1
        %v739 = vadd.f32 %v737, %v738
        %s740 = vtos %v739
        %v741 = vmul.f32 %v493, %v478
        %742 = vadd.xlane.f32.xlu0 %v741
        %v743 = vpop.xlane.xlu0 %742
        %v744 = vrot.slane %v743, 4
        %v745 = vadd.f32 %v743, %v744
        %v746 = vrot.slane %v745, 2
        %v747 = vadd.f32 %v745, %v746
        %v748 = vrot.slane %v747, 1
        %v749 = vadd.f32 %v747, %v748
        %s750 = vtos %v749
        %v751 = vlaneseq
        %v752 = vshrl.u32 %v751, 7
        %vm753 = vcmp.eq.s32.totalorder %v752, 0
        %v754 = vstv %s702
        %v755 = vsel %vm753, %v754, 0.0
        %v756 = vadd.f32 %v755, 0.0
        %vm757 = vcmp.eq.s32.totalorder %v752, 1
        %v758 = vstv %s712
        %v759 = vsel %vm757, %v758, 0.0
        %v760 = vadd.f32 %v756, %v759
        %vm761 = vcmp.eq.s32.totalorder %v752, 2
        %v762 = vstv %s722
        %v763 = vsel %vm761, %v762, 0.0
        %v764 = vadd.f32 %v760, %v763
        %vm765 = vcmp.eq.s32.totalorder %v752, 3
        %v766 = vstv %s731
        %v767 = vsel %vm765, %v766, 0.0
        %v768 = vadd.f32 %v764, %v767
        %vm769 = vcmp.eq.s32.totalorder %v752, 4
        %v770 = vstv %s740
        %v771 = vsel %vm769, %v770, 0.0
        %v772 = vadd.f32 %v768, %v771
        %vm773 = vcmp.eq.s32.totalorder %v752, 5
        %v774 = vstv %s750
        %v775 = vsel %vm773, %v774, 0.0
        %v776 = vadd.f32 %v772, %v775
        %v777 = vld [vmem:[#allocation2] sm:$0xff]
        %v778 = vadd.f32 %v777, %v776
        %779 = vst [vmem:[#allocation2] sm:$0xff] %v778
        // Predicated region
        $region65: #{tpu_custom_call.1} parent=39 // pred_check
          %p780 = pneg %p468
        $region66: #{tpu_custom_call.1} parent=39 // pred_check_branch
          %782 = sbr.rel (%p780) target = $region68
        $region67: #{tpu_custom_call.1} parent=39 // pred_region
          %v783 = vld [vmem:[#allocation2] sm:$0xff]
          %784 = vst [vmem:[%s467] sm:$0xff] %v783
        $region68: #{tpu_custom_call.1} parent=39 // pred_fallthru
          _
        %s785 = sand.u32 %s195, 1
        %s786 = scalar_lea.sflag [#allocation5], %s785
        %s787 = sand.u32 %s195, 1
        %s788 = smul.addr %s787, 8
        %s789 = scalar_lea.vmem [#allocation12], %s788
        %s790 = sand.u32 %s221, 1
        %s791 = scalar_lea.sflag [#allocation14], %s790
        %s792 = sand.u32 %s221, 1
        %s793 = smul.addr %s792, 8
        %s794 = scalar_lea.vmem [#allocation13], %s793
        // Predicated region
        $region69: #{tpu_custom_call.1} parent=39 // pred_check
          %p795 = pneg %p205
        $region70: #{tpu_custom_call.1} parent=39 // pred_check_branch
          %797 = sbr.rel (%p795) target = $region72
        $region71: #{tpu_custom_call.1} parent=39 // pred_region
          %799 = vsyncadd %s786, 0
          %s800 = sadd.s32 %s38, %s37
          %s801 = smul.addr %s800, 8
          %s802 = scalar_lea.hbm %s5, %s801
          %s804 = sshll.u32 %s789, 4
          %s805 = int_to_ptr.vmem [resolvable:$true] %s804
          %s806 = sshll.u32 %s802, 4
          %s807 = int_to_ptr.hbm [resolvable:$true] %s806
          %809 = dma.vmem_to_hbm [thread:$0]  %s805, 128, %s807, %s786
        $region72: #{tpu_custom_call.1} parent=39 // pred_fallthru
          _
        // Predicated region
        $region73: #{tpu_custom_call.1} parent=39 // pred_check
          %p810 = pneg %p231
        $region74: #{tpu_custom_call.1} parent=39 // pred_check_branch
          %812 = sbr.rel (%p810) target = $region76
        $region75: #{tpu_custom_call.1} parent=39 // pred_region
          %814 = vsyncadd %s791, 0
          %s815 = smul.addr %s37, 8
          %s816 = scalar_lea.hbm %s6, %s815
          %s818 = sshll.u32 %s794, 4
          %s819 = int_to_ptr.vmem [resolvable:$true] %s818
          %s820 = sshll.u32 %s816, 4
          %s821 = int_to_ptr.hbm [resolvable:$true] %s820
          %823 = dma.vmem_to_hbm [thread:$0]  %s819, 128, %s821, %s791
        $region76: #{tpu_custom_call.1} parent=39 // pred_fallthru
          _
      $region40: #{tpu_custom_call.1} parent=5 // pred_fallthru
        _
      %p824 = scmp.le.s32.totalorder 2, %s28
      // Predicated region
      $region77: #{tpu_custom_call.1} parent=5 // pred_check
        %p825 = pneg %p824
      $region78: #{tpu_custom_call.1} parent=5 // pred_check_branch
        %827 = sbr.rel (%p825) target = $region80
      $region79: #{tpu_custom_call.1} parent=5 // pred_region
        %s828 = ssub.s32 %s28, 2
        // Predicated region
        $region81: #{tpu_custom_call.1} parent=79 // pred_check
          %p829 = pneg %p211
        $region82: #{tpu_custom_call.1} parent=79 // pred_check_branch
          %831 = sbr.rel (%p829) target = $region84
        $region83: #{tpu_custom_call.1} parent=79 // pred_region
          %s832 = sand.u32 %s196, 1
          %s833 = scalar_lea.sflag [#allocation5], %s832
          %s834 = sand.u32 %s196, 1
          %s835 = smul.addr %s834, 8
          %s836 = scalar_lea.vmem [#allocation12], %s835
          %838 = dma.done %s833, 128
        $region84: #{tpu_custom_call.1} parent=79 // pred_fallthru
          _
        // Predicated region
        $region85: #{tpu_custom_call.1} parent=79 // pred_check
          %p839 = pneg %p237
        $region86: #{tpu_custom_call.1} parent=79 // pred_check_branch
          %841 = sbr.rel (%p839) target = $region88
        $region87: #{tpu_custom_call.1} parent=79 // pred_region
          %s842 = sand.u32 %s222, 1
          %s843 = scalar_lea.sflag [#allocation14], %s842
          %s844 = sand.u32 %s222, 1
          %s845 = smul.addr %s844, 8
          %s846 = scalar_lea.vmem [#allocation13], %s845
          %848 = dma.done %s843, 128
        $region88: #{tpu_custom_call.1} parent=79 // pred_fallthru
          _
      $region80: #{tpu_custom_call.1} parent=5 // pred_fallthru
        _
    $region6: #{tpu_custom_call.1} parent=1 // loop_footer
      %s32 = sadd.s32 1, %s28
    $region7: #{tpu_custom_call.1} parent=1 // loop_footer_branch
      %27 = sbr.rel target = $region3
    $region8: #{tpu_custom_call.1} parent=1 // loop_exit
      _
    %849 = vsyncpa [#allocation4], 1
    %s850 = scalar_lea.sflag [#allocation4], 1
    %851 = vsyncpa %s850, 1
    %852 = vsyncpa [#allocation7], 1
    %s853 = scalar_lea.sflag [#allocation7], 1
    %854 = vsyncpa %s853, 1
    %855 = vsyncpa [#allocation10], 1
    %s856 = scalar_lea.sflag [#allocation10], 1
    %857 = vsyncpa %s856, 1
    %858 = vsyncpa [#allocation5], 1
    %s859 = scalar_lea.sflag [#allocation5], 1
    %860 = vsyncpa %s859, 1
    %861 = vsyncpa [#allocation14], 1
    %s862 = scalar_lea.sflag [#allocation14], 1
    %863 = vsyncpa %s862, 1

</llo_original>
